<compile_context>
chip_gen: v5e
topology: v5e:2x2
jax: 0.10.0
libtpu: 0.0.40
codegen_flags: <defaults>
</compile_context>

<pallas_src>
import functools

import jax
import jax.numpy as jnp
from jax.experimental import pallas as pl
from jax.experimental.pallas import tpu as pltpu


# ----------------------------------------------------------------------------
# Kernel 1: fused GCN -> PReLU -> readout -> bilinear projection per block of
# subgraphs.  Gridded over batch blocks; everything stays in VMEM / vregs.
# ----------------------------------------------------------------------------
def _gcn_readout_kernel(readout, feat_ref, adj_ref, w_ref, b_ref, alpha_ref,
                        bw_ref, o_ref):
    s1 = feat_ref.shape[0]            # subgraph_size + 1 (static)
    n_h = w_ref.shape[1]

    w = w_ref[...]                    # (n_in, n_h)  GCN linear (no bias)
    bias = b_ref[...]                 # (1, n_h)     GCN bias
    bw = bw_ref[...]                  # (n_h, n_h)   bilinear weight
    alpha = alpha_ref[0, 0]           # PReLU slope (SMEM scalar)

    # --- GCN fc: one (block_rows, n_in)@(n_in, n_h) matmul per node slot ----
    seq = [jnp.dot(feat_ref[t], w, preferred_element_type=jnp.float32)
           for t in range(s1)]        # s1 x (bt, n_h)

    adjc = adj_ref[...]               # (bt, s1*s1), row-major over (row, col)

    # --- adjacency aggregation (+bias) + PReLU, all on the VPU --------------
    h = []
    for r in range(s1):               # static, s1 is tiny (e.g. 5)
        acc = bias + adjc[:, r * s1:r * s1 + 1] * seq[0]
        for t in range(1, s1):
            acc = acc + adjc[:, r * s1 + t:r * s1 + t + 1] * seq[t]
        h.append(jnp.where(acc >= 0.0, acc, alpha * acc))

    h_mv = h[s1 - 1]                  # target-node embedding   (bt, n_h)
    ctx = h[:s1 - 1]                  # context-node embeddings

    if readout == "avg":
        c = ctx[0]
        for t in range(1, s1 - 1):
            c = c + ctx[t]
        c = c * (1.0 / (s1 - 1))
    elif readout == "max":
        c = ctx[0]
        for t in range(1, s1 - 1):
            c = jnp.maximum(c, ctx[t])
    elif readout == "min":
        c = ctx[0]
        for t in range(1, s1 - 1):
            c = jnp.minimum(c, ctx[t])
    elif readout == "weighted_sum":
        # TODO(synk): query row follows the torch reference literally
        # (h_1[:, -2:-1, :], i.e. the inserted zero-feature row's embedding).
        query = h[s1 - 2]
        sims = [jnp.sum(ctx[t] * query, axis=-1, keepdims=True)
                for t in range(s1 - 1)]                       # (bt, 1) each
        m = sims[0]
        for t in range(1, s1 - 1):
            m = jnp.maximum(m, sims[t])
        es = [jnp.exp(s - m) for s in sims]
        z = es[0]
        for t in range(1, s1 - 1):
            z = z + es[t]
        inv_z = 1.0 / z
        c = ctx[0] * (es[0] * inv_z)
        for t in range(1, s1 - 1):
            c = c + ctx[t] * (es[t] * inv_z)
    else:
        raise ValueError(f"unknown readout: {readout}")

    # --- bilinear projection: one batched (bt, n_h)@(n_h, n_h) matmul -------
    h_a = jnp.dot(h_mv, bw, preferred_element_type=jnp.float32)

    # lane-dense packed output slab [c | h_mv @ W_bil]
    o_ref[:, :n_h] = c
    o_ref[:, n_h:] = h_a


# ----------------------------------------------------------------------------
# Kernel 2: discriminator scores (positive + negsamp shuffled rounds).
# Needs the whole (true) batch, so it is a single full-array kernel.
# ----------------------------------------------------------------------------
def _disc_kernel(ch_ref, bb_ref, o_ref):
    packed = ch_ref[...]              # (B, 2*n_h) = [c | h_mv @ W_bil]
    n_h = packed.shape[1] // 2
    nb = packed.shape[0]
    negsamp = o_ref.shape[1] - 1
    c = packed[:, :n_h]
    h_a = packed[:, n_h:]
    bias = bb_ref[0, 0]               # SMEM scalar

    cols = [jnp.sum(h_a * c, axis=-1, keepdims=True) + bias]   # positive
    c_mi = c
    for _ in range(negsamp):
        # negative-sample shuffle, exactly as torch: cat(c[-2:-1], c[:-1])
        c_mi = jnp.concatenate(
            [c_mi[nb - 2:nb - 1, :], c_mi[:nb - 1, :]], axis=0)
        cols.append(jnp.sum(h_a * c_mi, axis=-1, keepdims=True) + bias)
    o_ref[...] = jnp.concatenate(cols, axis=1)                  # (B, 1+neg)


# ----------------------------------------------------------------------------
# Wrapper: subgraph gather + zero row/col padding (layout plumbing, no FLOPs)
# ----------------------------------------------------------------------------
def build_batch(x, adj, idx, subgraphs, subgraph_size):
    n_in = x.shape[-1]
    sub = subgraphs[jnp.asarray(idx)]                         # (B, S)
    bsz = sub.shape[0]
    feat = x[0][sub]                                          # (B, S, n_in)
    a = adj[0][sub[:, :, None], sub[:, None, :]]              # (B, S, S)
    # added_adj_zero_row then added_adj_zero_col (with 1.0 at the last row)
    a = jnp.concatenate([a, jnp.zeros((bsz, 1, subgraph_size), a.dtype)],
                        axis=1)
    col = jnp.zeros((bsz, subgraph_size + 1, 1), a.dtype).at[:, -1, :].set(1.0)
    a = jnp.concatenate([a, col], axis=2)                     # (B, S+1, S+1)
    # insert the zero-feature row before the last node
    feat = jnp.concatenate(
        [feat[:, :-1, :], jnp.zeros((bsz, 1, n_in), feat.dtype),
         feat[:, -1:, :]], axis=1)                            # (B, S+1, n_in)
    return feat, a


def cola_forward(params, x, adj, idx, subgraphs, subgraph_size, readout="avg",
                 negsamp_round=1, block_rows=128):
    assert block_rows % 8 == 0, "block_rows must be sublane-aligned (mult of 8)"
    n_in = x.shape[-1]
    n_h = params["gcn_w"].shape[1]
    s1 = subgraph_size + 1

    feat, a = build_batch(x, adj, idx, subgraphs, subgraph_size)
    bsz = feat.shape[0]

    # Pad the batch to a multiple of block_rows.  Padded rows are harmless in
    # kernel 1 (zero adjacency -> PReLU(bias)) and are sliced off before the
    # discriminator shuffle.
    pad = (-bsz) % block_rows
    if pad:
        feat = jnp.concatenate(
            [feat, jnp.zeros((pad, s1, n_in), feat.dtype)], axis=0)
        a = jnp.concatenate(
            [a, jnp.zeros((pad, s1, s1), a.dtype)], axis=0)
    bpad = bsz + pad

    feat_nm = jnp.transpose(feat, (1, 0, 2))                  # (s1, Bpad, n_in)
    adjc = a.reshape(bpad, s1 * s1)                           # (Bpad, s1*s1)

    packed = pl.pallas_call(
        functools.partial(_gcn_readout_kernel, readout),
        out_shape=jax.ShapeDtypeStruct((bpad, 2 * n_h), jnp.float32),
        grid=(bpad // block_rows,),
        in_specs=[
            pl.BlockSpec((s1, block_rows, n_in), lambda i: (0, i, 0)),
            pl.BlockSpec((block_rows, s1 * s1), lambda i: (i, 0)),
            pl.BlockSpec((n_in, n_h), lambda i: (0, 0)),
            pl.BlockSpec((1, n_h), lambda i: (0, 0)),
            pl.BlockSpec(memory_space=pltpu.MemorySpace.SMEM),   # prelu_alpha
            pl.BlockSpec((n_h, n_h), lambda i: (0, 0)),
        ],
        out_specs=pl.BlockSpec((block_rows, 2 * n_h), lambda i: (i, 0)),
        compiler_params=pltpu.CompilerParams(
            dimension_semantics=("parallel",)),
    )(feat_nm, adjc, params["gcn_w"], params["gcn_b"].reshape(1, -1),
      params["prelu_alpha"], params["bil_w"])

    scores = pl.pallas_call(
        _disc_kernel,
        out_shape=jax.ShapeDtypeStruct((bsz, 1 + negsamp_round), jnp.float32),
        in_specs=[pl.BlockSpec(memory_space=pltpu.MemorySpace.VMEM),
                  pl.BlockSpec(memory_space=pltpu.MemorySpace.SMEM)],
        out_specs=pl.BlockSpec(memory_space=pltpu.MemorySpace.VMEM),
    )(packed[:bsz], params["bil_b"])

    # torch.cat(scs) ordering: round-major, then batch.
    return scores.T.reshape(-1, 1)


# ----------------------------------------------------------------------------
# Pure-JAX reference (same math) for a correctness check
# ----------------------------------------------------------------------------
def cola_reference(params, x, adj, idx, subgraphs, subgraph_size, readout,
                   negsamp_round):
    feat, a = build_batch(x, adj, idx, subgraphs, subgraph_size)
    hp = jax.lax.Precision.HIGHEST
    seq = jnp.einsum("bsi,ih->bsh", feat, params["gcn_w"], precision=hp)
    out = jnp.einsum("bst,bth->bsh", a, seq, precision=hp) + params["gcn_b"]
    alpha = params["prelu_alpha"][0, 0]
    h1 = jnp.where(out >= 0.0, out, alpha * out)
    h_mv = h1[:, -1, :]
    ctx = h1[:, :-1, :]
    if readout == "avg":
        c = jnp.mean(ctx, axis=1)
    elif readout == "max":
        c = jnp.max(ctx, axis=1)
    elif readout == "min":
        c = jnp.min(ctx, axis=1)
    else:  # weighted_sum
        query = h1[:, -2:-1, :]
        sim = jax.nn.softmax(jnp.sum(ctx * query, axis=-1, keepdims=True),
                             axis=1)
        c = jnp.sum(ctx * sim, axis=1)

    def bilinear(x1, x2):
        v = jnp.einsum("bi,ij,bj->b", x1, params["bil_w"], x2, precision=hp)
        return v[:, None] + params["bil_b"]

    scs = [bilinear(h_mv, c)]
    c_mi = c
    for _ in range(negsamp_round):
        c_mi = jnp.concatenate([c_mi[-2:-1, :], c_mi[:-1, :]], axis=0)
        scs.append(bilinear(h_mv, c_mi))
    return jnp.concatenate(scs, axis=0)


# ----------------------------------------------------------------------------
if __name__ == "__main__":
    N_NODES, N_IN, N_H = 32, 32, 64
    SUBGRAPH_SIZE, BATCH_SIZE, NEGSAMP_ROUND = 4, 32, 2
    READOUT = "avg"
    BLOCK_ROWS = 16            # 2 grid steps here; use 128-512 for real batches

    key = jax.random.PRNGKey(0)
    k_x, k_adj, k_sub, k_w1, k_w2 = jax.random.split(key, 5)

    x = jax.random.normal(k_x, (1, N_NODES, N_IN), jnp.float32)
    a0 = (jax.random.uniform(k_adj, (N_NODES, N_NODES)) < 0.3).astype(jnp.float32)
    a0 = jnp.clip(jnp.maximum(a0, a0.T) + jnp.eye(N_NODES, dtype=jnp.float32),
                  0.0, 1.0)
    a0 = a0 / jnp.sum(a0, axis=1, keepdims=True)              # row-normalized
    adj = a0[None]                                            # (1, N, N)

    subgraphs = jax.random.randint(k_sub, (N_NODES, SUBGRAPH_SIZE), 0, N_NODES)
    subgraphs = subgraphs.at[:, 0].set(jnp.arange(N_NODES))
    idx = jnp.arange(BATCH_SIZE)

    def xavier(k, shape):
        bound = (6.0 / (shape[0] + shape[1])) ** 0.5
        return jax.random.uniform(k, shape, jnp.float32, -bound, bound)

    params = {
        "gcn_w": xavier(k_w1, (N_IN, N_H)),
        "gcn_b": jnp.zeros((N_H,), jnp.float32),
        "prelu_alpha": jnp.full((1, 1), 0.25, jnp.float32),
        "bil_w": xavier(k_w2, (N_H, N_H)),        # xavier per Discriminator init
        "bil_b": jnp.zeros((1, 1), jnp.float32),  # bias filled with 0.0
    }

    logits = cola_forward(params, x, adj, idx, subgraphs, SUBGRAPH_SIZE,
                          readout=READOUT, negsamp_round=NEGSAMP_ROUND,
                          block_rows=BLOCK_ROWS)
    jax.block_until_ready(logits)

    assert logits.shape == ((1 + NEGSAMP_ROUND) * BATCH_SIZE, 1)
    assert bool(jnp.all(jnp.isfinite(logits)))
    ref = cola_reference(params, x, adj, idx, subgraphs, SUBGRAPH_SIZE,
                         READOUT, NEGSAMP_ROUND)
    assert bool(jnp.allclose(logits, ref, atol=5e-2, rtol=5e-2)), \
        float(jnp.max(jnp.abs(logits - ref)))
    print("KERNEL_OK")
</pallas_src>

<mosaic_0001>
module attributes {stable_mosaic.version = 11 : i64} {
  func.func @_gcn_readout_kernel(%arg0: i32, %arg1: memref<5x16x32xf32, #tpu.memory_space<vmem>>, %arg2: memref<16x25xf32, #tpu.memory_space<vmem>>, %arg3: memref<32x64xf32, #tpu.memory_space<vmem>>, %arg4: memref<1x64xf32, #tpu.memory_space<vmem>>, %arg5: memref<1x1xf32, #tpu.memory_space<smem>>, %arg6: memref<64x64xf32, #tpu.memory_space<vmem>>, %arg7: memref<16x128xf32, #tpu.memory_space<vmem>>) attributes {dimension_semantics = [#tpu.dimension_semantics<parallel>], iteration_bounds = array<i64: 2>, scalar_prefetch = 0 : i64, scratch_operands = 0 : i64, tpu.core_type = #tpu.core_type<tc>, window_params = [{transform_indices = @transform_0, window_bounds = array<i64: 5, 16, 32>}, {transform_indices = @transform_1, window_bounds = array<i64: 16, 25>}, {pipeline_mode = #tpu.pipeline_mode<synchronous>, transform_indices = @transform_2, window_bounds = array<i64: 32, 64>}, {pipeline_mode = #tpu.pipeline_mode<synchronous>, transform_indices = @transform_3, window_bounds = array<i64: 1, 64>}, {transform_indices = @transform_4, window_bounds = array<i64: 1, 1>}, {pipeline_mode = #tpu.pipeline_mode<synchronous>, transform_indices = @transform_5, window_bounds = array<i64: 64, 64>}, {transform_indices = @transform_6, window_bounds = array<i64: 16, 128>}]} {
    %c0 = arith.constant 0 : index
    %c0_0 = arith.constant 0 : index
    %0 = vector.load %arg3[%c0, %c0_0] : memref<32x64xf32, #tpu.memory_space<vmem>>, vector<32x64xf32>
    %c0_1 = arith.constant 0 : index
    %c0_2 = arith.constant 0 : index
    %1 = vector.load %arg4[%c0_1, %c0_2] : memref<1x64xf32, #tpu.memory_space<vmem>>, vector<1x64xf32>
    %c0_3 = arith.constant 0 : index
    %c0_4 = arith.constant 0 : index
    %2 = vector.load %arg6[%c0_3, %c0_4] : memref<64x64xf32, #tpu.memory_space<vmem>>, vector<64x64xf32>
    %c0_5 = arith.constant 0 : index
    %c0_6 = arith.constant 0 : index
    %3 = memref.load %arg5[%c0_5, %c0_6] : memref<1x1xf32, #tpu.memory_space<smem>>
    %c0_7 = arith.constant 0 : index
    %c0_8 = arith.constant 0 : index
    %c0_9 = arith.constant 0 : index
    %4 = vector.load %arg1[%c0_7, %c0_8, %c0_9] : memref<5x16x32xf32, #tpu.memory_space<vmem>>, vector<1x16x32xf32>
    %5 = vector.shape_cast %4 : vector<1x16x32xf32> to vector<16x32xf32>
    %cst = arith.constant dense<0.000000e+00> : vector<16x64xf32>
    %6 = tpu.matmul %5, %0, %cst {dimension_numbers = #tpu.dot_dimension_numbers<[1], [0], [0], [1], [0, 0, 1, 1], [], []>} : vector<16x32xf32>, vector<32x64xf32>, vector<16x64xf32> -> vector<16x64xf32>
    %c1 = arith.constant 1 : index
    %c0_10 = arith.constant 0 : index
    %c0_11 = arith.constant 0 : index
    %7 = vector.load %arg1[%c1, %c0_10, %c0_11] : memref<5x16x32xf32, #tpu.memory_space<vmem>>, vector<1x16x32xf32>
    %8 = vector.shape_cast %7 : vector<1x16x32xf32> to vector<16x32xf32>
    %cst_12 = arith.constant dense<0.000000e+00> : vector<16x64xf32>
    %9 = tpu.matmul %8, %0, %cst_12 {dimension_numbers = #tpu.dot_dimension_numbers<[1], [0], [0], [1], [0, 0, 1, 1], [], []>} : vector<16x32xf32>, vector<32x64xf32>, vector<16x64xf32> -> vector<16x64xf32>
    %c2 = arith.constant 2 : index
    %c0_13 = arith.constant 0 : index
    %c0_14 = arith.constant 0 : index
    %10 = vector.load %arg1[%c2, %c0_13, %c0_14] : memref<5x16x32xf32, #tpu.memory_space<vmem>>, vector<1x16x32xf32>
    %11 = vector.shape_cast %10 : vector<1x16x32xf32> to vector<16x32xf32>
    %cst_15 = arith.constant dense<0.000000e+00> : vector<16x64xf32>
    %12 = tpu.matmul %11, %0, %cst_15 {dimension_numbers = #tpu.dot_dimension_numbers<[1], [0], [0], [1], [0, 0, 1, 1], [], []>} : vector<16x32xf32>, vector<32x64xf32>, vector<16x64xf32> -> vector<16x64xf32>
    %c3 = arith.constant 3 : index
    %c0_16 = arith.constant 0 : index
    %c0_17 = arith.constant 0 : index
    %13 = vector.load %arg1[%c3, %c0_16, %c0_17] : memref<5x16x32xf32, #tpu.memory_space<vmem>>, vector<1x16x32xf32>
    %14 = vector.shape_cast %13 : vector<1x16x32xf32> to vector<16x32xf32>
    %cst_18 = arith.constant dense<0.000000e+00> : vector<16x64xf32>
    %15 = tpu.matmul %14, %0, %cst_18 {dimension_numbers = #tpu.dot_dimension_numbers<[1], [0], [0], [1], [0, 0, 1, 1], [], []>} : vector<16x32xf32>, vector<32x64xf32>, vector<16x64xf32> -> vector<16x64xf32>
    %c4 = arith.constant 4 : index
    %c0_19 = arith.constant 0 : index
    %c0_20 = arith.constant 0 : index
    %16 = vector.load %arg1[%c4, %c0_19, %c0_20] : memref<5x16x32xf32, #tpu.memory_space<vmem>>, vector<1x16x32xf32>
    %17 = vector.shape_cast %16 : vector<1x16x32xf32> to vector<16x32xf32>
    %cst_21 = arith.constant dense<0.000000e+00> : vector<16x64xf32>
    %18 = tpu.matmul %17, %0, %cst_21 {dimension_numbers = #tpu.dot_dimension_numbers<[1], [0], [0], [1], [0, 0, 1, 1], [], []>} : vector<16x32xf32>, vector<32x64xf32>, vector<16x64xf32> -> vector<16x64xf32>
    %c0_22 = arith.constant 0 : index
    %c0_23 = arith.constant 0 : index
    %19 = vector.load %arg2[%c0_22, %c0_23] : memref<16x25xf32, #tpu.memory_space<vmem>>, vector<16x25xf32>
    %20 = vector.extract_strided_slice %19 {offsets = [0, 0], sizes = [16, 1], strides = [1, 1]} : vector<16x25xf32> to vector<16x1xf32>
    %21 = vector.broadcast %20 : vector<16x1xf32> to vector<16x64xf32>
    %22 = arith.mulf %21, %6 : vector<16x64xf32>
    %23 = vector.broadcast %1 : vector<1x64xf32> to vector<16x64xf32>
    %24 = arith.addf %23, %22 : vector<16x64xf32>
    %25 = vector.extract_strided_slice %19 {offsets = [0, 1], sizes = [16, 1], strides = [1, 1]} : vector<16x25xf32> to vector<16x1xf32>
    %26 = vector.broadcast %25 : vector<16x1xf32> to vector<16x64xf32>
    %27 = arith.mulf %26, %9 : vector<16x64xf32>
    %28 = arith.addf %24, %27 : vector<16x64xf32>
    %29 = vector.extract_strided_slice %19 {offsets = [0, 2], sizes = [16, 1], strides = [1, 1]} : vector<16x25xf32> to vector<16x1xf32>
    %30 = vector.broadcast %29 : vector<16x1xf32> to vector<16x64xf32>
    %31 = arith.mulf %30, %12 : vector<16x64xf32>
    %32 = arith.addf %28, %31 : vector<16x64xf32>
    %33 = vector.extract_strided_slice %19 {offsets = [0, 3], sizes = [16, 1], strides = [1, 1]} : vector<16x25xf32> to vector<16x1xf32>
    %34 = vector.broadcast %33 : vector<16x1xf32> to vector<16x64xf32>
    %35 = arith.mulf %34, %15 : vector<16x64xf32>
    %36 = arith.addf %32, %35 : vector<16x64xf32>
    %37 = vector.extract_strided_slice %19 {offsets = [0, 4], sizes = [16, 1], strides = [1, 1]} : vector<16x25xf32> to vector<16x1xf32>
    %38 = vector.broadcast %37 : vector<16x1xf32> to vector<16x64xf32>
    %39 = arith.mulf %38, %18 : vector<16x64xf32>
    %40 = arith.addf %36, %39 : vector<16x64xf32>
    %cst_24 = arith.constant 0.000000e+00 : f32
    %41 = vector.broadcast %cst_24 : f32 to vector<16x64xf32>
    %42 = arith.cmpf oge, %40, %41 : vector<16x64xf32>
    %43 = vector.broadcast %3 : f32 to vector<16x64xf32>
    %44 = arith.mulf %43, %40 : vector<16x64xf32>
    %45 = arith.select %42, %40, %44 : vector<16x64xi1>, vector<16x64xf32>
    %46 = vector.extract_strided_slice %19 {offsets = [0, 5], sizes = [16, 1], strides = [1, 1]} : vector<16x25xf32> to vector<16x1xf32>
    %47 = vector.broadcast %46 : vector<16x1xf32> to vector<16x64xf32>
    %48 = arith.mulf %47, %6 : vector<16x64xf32>
    %49 = vector.broadcast %1 : vector<1x64xf32> to vector<16x64xf32>
    %50 = arith.addf %49, %48 : vector<16x64xf32>
    %51 = vector.extract_strided_slice %19 {offsets = [0, 6], sizes = [16, 1], strides = [1, 1]} : vector<16x25xf32> to vector<16x1xf32>
    %52 = vector.broadcast %51 : vector<16x1xf32> to vector<16x64xf32>
    %53 = arith.mulf %52, %9 : vector<16x64xf32>
    %54 = arith.addf %50, %53 : vector<16x64xf32>
    %55 = vector.extract_strided_slice %19 {offsets = [0, 7], sizes = [16, 1], strides = [1, 1]} : vector<16x25xf32> to vector<16x1xf32>
    %56 = vector.broadcast %55 : vector<16x1xf32> to vector<16x64xf32>
    %57 = arith.mulf %56, %12 : vector<16x64xf32>
    %58 = arith.addf %54, %57 : vector<16x64xf32>
    %59 = vector.extract_strided_slice %19 {offsets = [0, 8], sizes = [16, 1], strides = [1, 1]} : vector<16x25xf32> to vector<16x1xf32>
    %60 = vector.broadcast %59 : vector<16x1xf32> to vector<16x64xf32>
    %61 = arith.mulf %60, %15 : vector<16x64xf32>
    %62 = arith.addf %58, %61 : vector<16x64xf32>
    %63 = vector.extract_strided_slice %19 {offsets = [0, 9], sizes = [16, 1], strides = [1, 1]} : vector<16x25xf32> to vector<16x1xf32>
    %64 = vector.broadcast %63 : vector<16x1xf32> to vector<16x64xf32>
    %65 = arith.mulf %64, %18 : vector<16x64xf32>
    %66 = arith.addf %62, %65 : vector<16x64xf32>
    %cst_25 = arith.constant 0.000000e+00 : f32
    %67 = vector.broadcast %cst_25 : f32 to vector<16x64xf32>
    %68 = arith.cmpf oge, %66, %67 : vector<16x64xf32>
    %69 = vector.broadcast %3 : f32 to vector<16x64xf32>
    %70 = arith.mulf %69, %66 : vector<16x64xf32>
    %71 = arith.select %68, %66, %70 : vector<16x64xi1>, vector<16x64xf32>
    %72 = vector.extract_strided_slice %19 {offsets = [0, 10], sizes = [16, 1], strides = [1, 1]} : vector<16x25xf32> to vector<16x1xf32>
    %73 = vector.broadcast %72 : vector<16x1xf32> to vector<16x64xf32>
    %74 = arith.mulf %73, %6 : vector<16x64xf32>
    %75 = vector.broadcast %1 : vector<1x64xf32> to vector<16x64xf32>
    %76 = arith.addf %75, %74 : vector<16x64xf32>
    %77 = vector.extract_strided_slice %19 {offsets = [0, 11], sizes = [16, 1], strides = [1, 1]} : vector<16x25xf32> to vector<16x1xf32>
    %78 = vector.broadcast %77 : vector<16x1xf32> to vector<16x64xf32>
    %79 = arith.mulf %78, %9 : vector<16x64xf32>
    %80 = arith.addf %76, %79 : vector<16x64xf32>
    %81 = vector.extract_strided_slice %19 {offsets = [0, 12], sizes = [16, 1], strides = [1, 1]} : vector<16x25xf32> to vector<16x1xf32>
    %82 = vector.broadcast %81 : vector<16x1xf32> to vector<16x64xf32>
    %83 = arith.mulf %82, %12 : vector<16x64xf32>
    %84 = arith.addf %80, %83 : vector<16x64xf32>
    %85 = vector.extract_strided_slice %19 {offsets = [0, 13], sizes = [16, 1], strides = [1, 1]} : vector<16x25xf32> to vector<16x1xf32>
    %86 = vector.broadcast %85 : vector<16x1xf32> to vector<16x64xf32>
    %87 = arith.mulf %86, %15 : vector<16x64xf32>
    %88 = arith.addf %84, %87 : vector<16x64xf32>
    %89 = vector.extract_strided_slice %19 {offsets = [0, 14], sizes = [16, 1], strides = [1, 1]} : vector<16x25xf32> to vector<16x1xf32>
    %90 = vector.broadcast %89 : vector<16x1xf32> to vector<16x64xf32>
    %91 = arith.mulf %90, %18 : vector<16x64xf32>
    %92 = arith.addf %88, %91 : vector<16x64xf32>
    %cst_26 = arith.constant 0.000000e+00 : f32
    %93 = vector.broadcast %cst_26 : f32 to vector<16x64xf32>
    %94 = arith.cmpf oge, %92, %93 : vector<16x64xf32>
    %95 = vector.broadcast %3 : f32 to vector<16x64xf32>
    %96 = arith.mulf %95, %92 : vector<16x64xf32>
    %97 = arith.select %94, %92, %96 : vector<16x64xi1>, vector<16x64xf32>
    %98 = vector.extract_strided_slice %19 {offsets = [0, 15], sizes = [16, 1], strides = [1, 1]} : vector<16x25xf32> to vector<16x1xf32>
    %99 = vector.broadcast %98 : vector<16x1xf32> to vector<16x64xf32>
    %100 = arith.mulf %99, %6 : vector<16x64xf32>
    %101 = vector.broadcast %1 : vector<1x64xf32> to vector<16x64xf32>
    %102 = arith.addf %101, %100 : vector<16x64xf32>
    %103 = vector.extract_strided_slice %19 {offsets = [0, 16], sizes = [16, 1], strides = [1, 1]} : vector<16x25xf32> to vector<16x1xf32>
    %104 = vector.broadcast %103 : vector<16x1xf32> to vector<16x64xf32>
    %105 = arith.mulf %104, %9 : vector<16x64xf32>
    %106 = arith.addf %102, %105 : vector<16x64xf32>
    %107 = vector.extract_strided_slice %19 {offsets = [0, 17], sizes = [16, 1], strides = [1, 1]} : vector<16x25xf32> to vector<16x1xf32>
    %108 = vector.broadcast %107 : vector<16x1xf32> to vector<16x64xf32>
    %109 = arith.mulf %108, %12 : vector<16x64xf32>
    %110 = arith.addf %106, %109 : vector<16x64xf32>
    %111 = vector.extract_strided_slice %19 {offsets = [0, 18], sizes = [16, 1], strides = [1, 1]} : vector<16x25xf32> to vector<16x1xf32>
    %112 = vector.broadcast %111 : vector<16x1xf32> to vector<16x64xf32>
    %113 = arith.mulf %112, %15 : vector<16x64xf32>
    %114 = arith.addf %110, %113 : vector<16x64xf32>
    %115 = vector.extract_strided_slice %19 {offsets = [0, 19], sizes = [16, 1], strides = [1, 1]} : vector<16x25xf32> to vector<16x1xf32>
    %116 = vector.broadcast %115 : vector<16x1xf32> to vector<16x64xf32>
    %117 = arith.mulf %116, %18 : vector<16x64xf32>
    %118 = arith.addf %114, %117 : vector<16x64xf32>
    %cst_27 = arith.constant 0.000000e+00 : f32
    %119 = vector.broadcast %cst_27 : f32 to vector<16x64xf32>
    %120 = arith.cmpf oge, %118, %119 : vector<16x64xf32>
    %121 = vector.broadcast %3 : f32 to vector<16x64xf32>
    %122 = arith.mulf %121, %118 : vector<16x64xf32>
    %123 = arith.select %120, %118, %122 : vector<16x64xi1>, vector<16x64xf32>
    %124 = vector.extract_strided_slice %19 {offsets = [0, 20], sizes = [16, 1], strides = [1, 1]} : vector<16x25xf32> to vector<16x1xf32>
    %125 = vector.broadcast %124 : vector<16x1xf32> to vector<16x64xf32>
    %126 = arith.mulf %125, %6 : vector<16x64xf32>
    %127 = vector.broadcast %1 : vector<1x64xf32> to vector<16x64xf32>
    %128 = arith.addf %127, %126 : vector<16x64xf32>
    %129 = vector.extract_strided_slice %19 {offsets = [0, 21], sizes = [16, 1], strides = [1, 1]} : vector<16x25xf32> to vector<16x1xf32>
    %130 = vector.broadcast %129 : vector<16x1xf32> to vector<16x64xf32>
    %131 = arith.mulf %130, %9 : vector<16x64xf32>
    %132 = arith.addf %128, %131 : vector<16x64xf32>
    %133 = vector.extract_strided_slice %19 {offsets = [0, 22], sizes = [16, 1], strides = [1, 1]} : vector<16x25xf32> to vector<16x1xf32>
    %134 = vector.broadcast %133 : vector<16x1xf32> to vector<16x64xf32>
    %135 = arith.mulf %134, %12 : vector<16x64xf32>
    %136 = arith.addf %132, %135 : vector<16x64xf32>
    %137 = vector.extract_strided_slice %19 {offsets = [0, 23], sizes = [16, 1], strides = [1, 1]} : vector<16x25xf32> to vector<16x1xf32>
    %138 = vector.broadcast %137 : vector<16x1xf32> to vector<16x64xf32>
    %139 = arith.mulf %138, %15 : vector<16x64xf32>
    %140 = arith.addf %136, %139 : vector<16x64xf32>
    %141 = vector.extract_strided_slice %19 {offsets = [0, 24], sizes = [16, 1], strides = [1, 1]} : vector<16x25xf32> to vector<16x1xf32>
    %142 = vector.broadcast %141 : vector<16x1xf32> to vector<16x64xf32>
    %143 = arith.mulf %142, %18 : vector<16x64xf32>
    %144 = arith.addf %140, %143 : vector<16x64xf32>
    %cst_28 = arith.constant 0.000000e+00 : f32
    %145 = vector.broadcast %cst_28 : f32 to vector<16x64xf32>
    %146 = arith.cmpf oge, %144, %145 : vector<16x64xf32>
    %147 = vector.broadcast %3 : f32 to vector<16x64xf32>
    %148 = arith.mulf %147, %144 : vector<16x64xf32>
    %149 = arith.select %146, %144, %148 : vector<16x64xi1>, vector<16x64xf32>
    %150 = arith.addf %45, %71 : vector<16x64xf32>
    %151 = arith.addf %150, %97 : vector<16x64xf32>
    %152 = arith.addf %151, %123 : vector<16x64xf32>
    %cst_29 = arith.constant 2.500000e-01 : f32
    %153 = vector.broadcast %cst_29 : f32 to vector<16x64xf32>
    %154 = arith.mulf %152, %153 : vector<16x64xf32>
    %cst_30 = arith.constant dense<0.000000e+00> : vector<16x64xf32>
    %155 = tpu.matmul %149, %2, %cst_30 {dimension_numbers = #tpu.dot_dimension_numbers<[1], [0], [0], [1], [0, 0, 1, 1], [], []>} : vector<16x64xf32>, vector<64x64xf32>, vector<16x64xf32> -> vector<16x64xf32>
    %c0_31 = arith.constant 0 : index
    %c0_32 = arith.constant 0 : index
    %156 = vector.load %arg7[%c0_31, %c0_32] : memref<16x128xf32, #tpu.memory_space<vmem>>, vector<16x64xf32>
    tpu.vector_store %arg7[%c0_31, %c0_32], %154 {strides = array<i32>} : memref<16x128xf32, #tpu.memory_space<vmem>>, vector<16x64xf32>,
    %c0_33 = arith.constant 0 : index
    %c64 = arith.constant 64 : index
    %157 = vector.load %arg7[%c0_33, %c64] : memref<16x128xf32, #tpu.memory_space<vmem>>, vector<16x64xf32>
    tpu.vector_store %arg7[%c0_33, %c64], %155 {strides = array<i32>} : memref<16x128xf32, #tpu.memory_space<vmem>>, vector<16x64xf32>,
    return
  }
  func.func @transform_0(%arg0: i32) -> (i32, i32, i32) {
    %c0_i32 = arith.constant 0 : i32
    %c0_i32_0 = arith.constant 0 : i32
    %c0_i32_1 = arith.constant 0 : i32
    return %c0_i32, %arg0, %c0_i32_0 : i32, i32, i32
  }
  func.func @transform_1(%arg0: i32) -> (i32, i32) {
    %c0_i32 = arith.constant 0 : i32
    %c0_i32_0 = arith.constant 0 : i32
    return %arg0, %c0_i32 : i32, i32
  }
  func.func @transform_2(%arg0: i32) -> (i32, i32) {
    %c0_i32 = arith.constant 0 : i32
    %c0_i32_0 = arith.constant 0 : i32
    %c0_i32_1 = arith.constant 0 : i32
    return %c0_i32, %c0_i32_0 : i32, i32
  }
  func.func @transform_3(%arg0: i32) -> (i32, i32) {
    %c0_i32 = arith.constant 0 : i32
    %c0_i32_0 = arith.constant 0 : i32
    %c0_i32_1 = arith.constant 0 : i32
    return %c0_i32, %c0_i32_0 : i32, i32
  }
  func.func @transform_4(%arg0: i32) -> (i32, i32) {
    %c0_i32 = arith.constant 0 : i32
    %c0_i32_0 = arith.constant 0 : i32
    %c0_i32_1 = arith.constant 0 : i32
    return %c0_i32, %c0_i32_0 : i32, i32
  }
  func.func @transform_5(%arg0: i32) -> (i32, i32) {
    %c0_i32 = arith.constant 0 : i32
    %c0_i32_0 = arith.constant 0 : i32
    %c0_i32_1 = arith.constant 0 : i32
    return %c0_i32, %c0_i32_0 : i32, i32
  }
  func.func @transform_6(%arg0: i32) -> (i32, i32) {
    %c0_i32 = arith.constant 0 : i32
    %c0_i32_0 = arith.constant 0 : i32
    return %arg0, %c0_i32 : i32, i32
  }
}

</mosaic_0001>

<llo_original>
// kernel: tpu_custom_call.1
$region0: #{tpu_custom_call.1}
  #allocation0 [shape = 'u32[]', space=smem, size = 0x4, offset = 0x4, fixed_abs, tag = 'smem constant byte address 0x4 - core index']
  #allocation1 [shape = 'u32[72,128]{1,0:T(1,128)}', space=vmem, size = 0x9000, scoped, tag = 'internal scratch']
  #allocation2 [shape = 'f32[1,1]{1,0:T(1,128)S(6)}', space=smem, size = 0x200, scoped, tag = 'scoped memory for tpu_custom_call.1']
  #allocation12 [shape = 's32[]', space=sflag, size = 0x4, offset = 0, fixed_abs, tag = 'sflag constant byte address 0x0 - dummy sync flag']
  %s0 = inlined_call_operand.hbm [shape: f32[5,32,32], index: 0, kind: input, shape index: {}]
  %s1 = inlined_call_operand.hbm [shape: f32[32,25], index: 1, kind: input, shape index: {}]
  %s2 = inlined_call_operand.hbm [shape: f32[32,64], index: 2, kind: input, shape index: {}]
  %s3 = inlined_call_operand.vmem [shape: f32[1,64], index: 3, kind: input, shape index: {}]
  %s4 = inlined_call_operand.<no memory space> [shape: f32[1,1], index: 4, kind: input, shape index: {}]
  %s5 = inlined_call_operand.hbm [shape: f32[64,64], index: 5, kind: input, shape index: {}]
  %s6 = inlined_call_operand.hbm [shape: f32[32,128], index: 6, kind: output, shape index: {}]
  %s7 = sld [smem:[#allocation0]]
  $region73: #{tpu_custom_call.1} parent=0
    _
  %s9 = ssub.s32 1, %s7
  %s10 = scalar_select 0, %s9, %s7
  %11 = sst [smem:[#allocation2]] %s4
  $region1: #{tpu_custom_call.1} parent=0
    #allocation3 [shape = 'u8[81920]{0}', space=vmem, size = 0x14000, scoped, tag = 'input window, operand 0']
    #allocation4 [shape = 's32[2]{0}', space=sflag, size = 0x8, scoped, tag = 'scoped memory for tpu_custom_call.1']
    #allocation5 [shape = 's32[2]{0}', space=sflag, size = 0x8, scoped, tag = 'scoped memory for tpu_custom_call.1']
    #allocation6 [shape = 'u8[16384]{0}', space=vmem, size = 0x4000, scoped, tag = 'input window, operand 1']
    #allocation7 [shape = 's32[2]{0}', space=sflag, size = 0x8, scoped, tag = 'scoped memory for tpu_custom_call.1']
    #allocation8 [shape = 'u8[16384]{0}', space=vmem, size = 0x4000, scoped, tag = 'input window, operand 2, single buffered']
    #allocation9 [shape = 'u8[32768]{0}', space=vmem, size = 0x8000, scoped, tag = 'input window, operand 5, single buffered']
    #allocation10 [shape = 's32[1]{0}', space=sflag, size = 0x4, scoped, tag = 'scoped memory for tpu_custom_call.1']
    #allocation11 [shape = 'u8[16384]{0}', space=vmem, size = 0x4000, scoped, tag = 'output window, operand 0']
    %12 = vsyncpa [#allocation4], 0
    %s13 = scalar_lea.sflag [#allocation4], 1
    %14 = vsyncpa %s13, 0
    %15 = vsyncpa [#allocation7], 0
    %s16 = scalar_lea.sflag [#allocation7], 1
    %17 = vsyncpa %s16, 0
    %18 = vsyncpa [#allocation10], 0
    %19 = vsyncpa [#allocation5], 0
    %s20 = scalar_lea.sflag [#allocation5], 1
    %21 = vsyncpa %s20, 0
    loop: start=0, step=1, limit=4
    $region2: #{tpu_custom_call.1} parent=1 // loop_pre_header
      _
    $region3: #{tpu_custom_call.1} parent=1 // loop_header
      %s23 = sphi 0, %s27
      %p24 = scmp.ge.s32.totalorder %s23, 4
      %s33 = sphi 0, %s35
      %s36 = sphi 0, %s33
      %s37 = sphi 0, %s36
      %s53 = sphi 0, %s37
      %s59 = sphi 0, %s61
      %s62 = sphi 0, %s59
      %s63 = sphi 0, %s62
      %s79 = sphi 0, %s63
      %s83 = sphi 0, %s83
      %s85 = sphi 0, %s83
      %s86 = sphi 0, %s85
      %s100 = sphi 0, %s86
      %s104 = sphi 0, %s104
      %s106 = sphi 0, %s104
      %s107 = sphi 0, %s106
      %s121 = sphi 0, %s107
      %s125 = sphi 0, %s125
      %s127 = sphi 0, %s125
      %s128 = sphi 0, %s127
      %s142 = sphi 0, %s128
      %s146 = sphi 0, %s146
      %s148 = sphi 0, %s146
      %s149 = sphi 0, %s148
      %s163 = sphi 0, %s149
      %s169 = sphi 0, %s171
      %s172 = sphi 0, %s169
      %s173 = sphi 0, %s172
      %s189 = sphi 0, %s173
    $region4: #{tpu_custom_call.1} parent=1 // loop_header_branch
      %26 = sbr.rel (%p24) target = $region8
    $region5: #{tpu_custom_call.1} parent=1 // loop_body
      %s28 = ssub.s32 %s23, 1
      %s29 = ssub.s32 %s23, 2
      %s30 = sadd.s32 %s23, 1
      %s31 = ssub.s32 %s23, %s30
      %p32 = scmp.eq.s32.totalorder %s31, 0
      %s34 = sadd.s32 %s33, 1
      %s35 = scalar_select %p32, %s33, %s34
      %p38 = pneg %p32
      %p39 = scmp.eq.s32.totalorder %s23, 1
      %p40 = por %p38, %p39
      %p41 = scmp.ne.s32.totalorder %s33, %s36
      %p42 = scmp.eq.s32.totalorder %s23, 0
      %p43 = por %p41, %p42
      %p44 = scmp.ne.s32.totalorder %s33, %s36
      %p45 = scmp.eq.s32.totalorder %s28, 1
      %p46 = por %p44, %p45
      %p47 = scmp.ne.s32.totalorder %s36, %s37
      %p48 = scmp.eq.s32.totalorder %s28, 0
      %p49 = por %p47, %p48
      %p50 = scmp.ne.s32.totalorder %s36, %s37
      %p51 = scmp.eq.s32.totalorder %s29, 1
      %p52 = por %p50, %p51
      %p54 = scmp.ne.s32.totalorder %s37, %s53
      %p55 = scmp.eq.s32.totalorder %s29, 0
      %p56 = por %p54, %p55
      %s57 = ssub.s32 %s23, %s30
      %p58 = scmp.eq.s32.totalorder %s57, 0
      %s60 = sadd.s32 %s59, 1
      %s61 = scalar_select %p58, %s59, %s60
      %p64 = pneg %p58
      %p65 = scmp.eq.s32.totalorder %s23, 1
      %p66 = por %p64, %p65
      %p67 = scmp.ne.s32.totalorder %s59, %s62
      %p68 = scmp.eq.s32.totalorder %s23, 0
      %p69 = por %p67, %p68
      %p70 = scmp.ne.s32.totalorder %s59, %s62
      %p71 = scmp.eq.s32.totalorder %s28, 1
      %p72 = por %p70, %p71
      %p73 = scmp.ne.s32.totalorder %s62, %s63
      %p74 = scmp.eq.s32.totalorder %s28, 0
      %p75 = por %p73, %p74
      %p76 = scmp.ne.s32.totalorder %s62, %s63
      %p77 = scmp.eq.s32.totalorder %s29, 1
      %p78 = por %p76, %p77
      %p80 = scmp.ne.s32.totalorder %s63, %s79
      %p81 = scmp.eq.s32.totalorder %s29, 0
      %p82 = por %p80, %p81
      %s84 = sadd.s32 %s83, 1
      %p87 = scmp.eq.s32.totalorder %s23, 1
      %p88 = scmp.ne.s32.totalorder %s83, %s85
      %p89 = scmp.eq.s32.totalorder %s23, 0
      %p90 = por %p88, %p89
      %p91 = scmp.ne.s32.totalorder %s83, %s85
      %p92 = scmp.eq.s32.totalorder %s28, 1
      %p93 = por %p91, %p92
      %p94 = scmp.ne.s32.totalorder %s85, %s86
      %p95 = scmp.eq.s32.totalorder %s28, 0
      %p96 = por %p94, %p95
      %p97 = scmp.ne.s32.totalorder %s85, %s86
      %p98 = scmp.eq.s32.totalorder %s29, 1
      %p99 = por %p97, %p98
      %p101 = scmp.ne.s32.totalorder %s86, %s100
      %p102 = scmp.eq.s32.totalorder %s29, 0
      %p103 = por %p101, %p102
      %s105 = sadd.s32 %s104, 1
      %p108 = scmp.eq.s32.totalorder %s23, 1
      %p109 = scmp.ne.s32.totalorder %s104, %s106
      %p110 = scmp.eq.s32.totalorder %s23, 0
      %p111 = por %p109, %p110
      %p112 = scmp.ne.s32.totalorder %s104, %s106
      %p113 = scmp.eq.s32.totalorder %s28, 1
      %p114 = por %p112, %p113
      %p115 = scmp.ne.s32.totalorder %s106, %s107
      %p116 = scmp.eq.s32.totalorder %s28, 0
      %p117 = por %p115, %p116
      %p118 = scmp.ne.s32.totalorder %s106, %s107
      %p119 = scmp.eq.s32.totalorder %s29, 1
      %p120 = por %p118, %p119
      %p122 = scmp.ne.s32.totalorder %s107, %s121
      %p123 = scmp.eq.s32.totalorder %s29, 0
      %p124 = por %p122, %p123
      %s126 = sadd.s32 %s125, 1
      %p129 = scmp.eq.s32.totalorder %s23, 1
      %p130 = scmp.ne.s32.totalorder %s125, %s127
      %p131 = scmp.eq.s32.totalorder %s23, 0
      %p132 = por %p130, %p131
      %p133 = scmp.ne.s32.totalorder %s125, %s127
      %p134 = scmp.eq.s32.totalorder %s28, 1
      %p135 = por %p133, %p134
      %p136 = scmp.ne.s32.totalorder %s127, %s128
      %p137 = scmp.eq.s32.totalorder %s28, 0
      %p138 = por %p136, %p137
      %p139 = scmp.ne.s32.totalorder %s127, %s128
      %p140 = scmp.eq.s32.totalorder %s29, 1
      %p141 = por %p139, %p140
      %p143 = scmp.ne.s32.totalorder %s128, %s142
      %p144 = scmp.eq.s32.totalorder %s29, 0
      %p145 = por %p143, %p144
      %s147 = sadd.s32 %s146, 1
      %p150 = scmp.eq.s32.totalorder %s23, 1
      %p151 = scmp.ne.s32.totalorder %s146, %s148
      %p152 = scmp.eq.s32.totalorder %s23, 0
      %p153 = por %p151, %p152
      %p154 = scmp.ne.s32.totalorder %s146, %s148
      %p155 = scmp.eq.s32.totalorder %s28, 1
      %p156 = por %p154, %p155
      %p157 = scmp.ne.s32.totalorder %s148, %s149
      %p158 = scmp.eq.s32.totalorder %s28, 0
      %p159 = por %p157, %p158
      %p160 = scmp.ne.s32.totalorder %s148, %s149
      %p161 = scmp.eq.s32.totalorder %s29, 1
      %p162 = por %p160, %p161
      %p164 = scmp.ne.s32.totalorder %s149, %s163
      %p165 = scmp.eq.s32.totalorder %s29, 0
      %p166 = por %p164, %p165
      %s167 = ssub.s32 %s23, %s30
      %p168 = scmp.eq.s32.totalorder %s167, 0
      %s170 = sadd.s32 %s169, 1
      %s171 = scalar_select %p168, %s169, %s170
      %p174 = pneg %p168
      %p175 = scmp.eq.s32.totalorder %s23, 1
      %p176 = por %p174, %p175
      %p177 = scmp.ne.s32.totalorder %s169, %s172
      %p178 = scmp.eq.s32.totalorder %s23, 0
      %p179 = por %p177, %p178
      %p180 = scmp.ne.s32.totalorder %s169, %s172
      %p181 = scmp.eq.s32.totalorder %s28, 1
      %p182 = por %p180, %p181
      %p183 = scmp.ne.s32.totalorder %s172, %s173
      %p184 = scmp.eq.s32.totalorder %s28, 0
      %p185 = por %p183, %p184
      %p186 = scmp.ne.s32.totalorder %s172, %s173
      %p187 = scmp.eq.s32.totalorder %s29, 1
      %p188 = por %p186, %p187
      %p190 = scmp.ne.s32.totalorder %s173, %s189
      %p191 = scmp.eq.s32.totalorder %s29, 0
      %p192 = por %p190, %p191
      %p193 = scmp.le.s32.totalorder 1, %s23
      %p194 = scmp.lt.s32.totalorder %s23, 3
      %p195 = pnand %p193, %p194
      %p196 = pneg %p195
      // Predicated region
      $region9: #{tpu_custom_call.1} parent=5 // pred_check
        _
      $region10: #{tpu_custom_call.1} parent=5 // pred_check_branch
        %198 = sbr.rel (%p195) target = $region12
      $region11: #{tpu_custom_call.1} parent=5 // pred_region
        %s199 = ssub.s32 %s23, 1
        // Predicated region
        $region13: #{tpu_custom_call.1} parent=11 // pred_check
          %p200 = pneg %p96
        $region14: #{tpu_custom_call.1} parent=11 // pred_check_branch
          %202 = sbr.rel (%p200) target = $region16
        $region15: #{tpu_custom_call.1} parent=11 // pred_region
          %204 = vsyncadd [#allocation7], 0
          %s205 = sshll.u32 %s2, 4
          %s206 = int_to_ptr.hbm [resolvable:$true] %s205
          %s207 = sshll.u32 [#allocation8], 4
          %s208 = int_to_ptr.vmem [resolvable:$true] %s207
          %213 = dma.hbm_to_vmem [thread:$0]  %s206, 512, %s208, [#allocation7], 128, 128, 8
        $region16: #{tpu_custom_call.1} parent=11 // pred_fallthru
          _
        // Predicated region
        $region17: #{tpu_custom_call.1} parent=11 // pred_check
          %p214 = pneg %p117
        $region18: #{tpu_custom_call.1} parent=11 // pred_check_branch
          %216 = sbr.rel (%p214) target = $region20
        $region19: #{tpu_custom_call.1} parent=11 // pred_region
          _
        $region20: #{tpu_custom_call.1} parent=11 // pred_fallthru
          _
        // Predicated region
        $region21: #{tpu_custom_call.1} parent=11 // pred_check
          %p217 = pneg %p138
        $region22: #{tpu_custom_call.1} parent=11 // pred_check_branch
          %219 = sbr.rel (%p217) target = $region24
        $region23: #{tpu_custom_call.1} parent=11 // pred_region
          _
        $region24: #{tpu_custom_call.1} parent=11 // pred_fallthru
          _
        // Predicated region
        $region25: #{tpu_custom_call.1} parent=11 // pred_check
          %p220 = pneg %p159
        $region26: #{tpu_custom_call.1} parent=11 // pred_check_branch
          %222 = sbr.rel (%p220) target = $region28
        $region27: #{tpu_custom_call.1} parent=11 // pred_region
          %224 = vsyncadd [#allocation10], 0
          %s225 = sshll.u32 %s5, 4
          %s226 = int_to_ptr.hbm [resolvable:$true] %s225
          %s227 = sshll.u32 [#allocation9], 4
          %s228 = int_to_ptr.vmem [resolvable:$true] %s227
          %233 = dma.hbm_to_vmem [thread:$0]  %s226, 1024, %s228, [#allocation10], 128, 128, 8
        $region28: #{tpu_custom_call.1} parent=11 // pred_fallthru
          _
      $region12: #{tpu_custom_call.1} parent=5 // pred_fallthru
        _
      %p234 = scmp.lt.s32.totalorder %s23, 2
      // Predicated region
      $region29: #{tpu_custom_call.1} parent=5 // pred_check
        %p235 = pneg %p234
      $region30: #{tpu_custom_call.1} parent=5 // pred_check_branch
        %237 = sbr.rel (%p235) target = $region32
      $region31: #{tpu_custom_call.1} parent=5 // pred_region
        // Predicated region
        $region33: #{tpu_custom_call.1} parent=31 // pred_check
          %p238 = pneg %p43
        $region34: #{tpu_custom_call.1} parent=31 // pred_check_branch
          %240 = sbr.rel (%p238) target = $region36
        $region35: #{tpu_custom_call.1} parent=31 // pred_region
          #allocation13 [shape = 'u32[6]{0}', space=smem, size = 0x18, scoped, tag = 'DMA stride descriptor']
          %s241 = sand.u32 %s33, 1
          %s242 = scalar_lea.sflag [#allocation4], %s241
          %s243 = sand.u32 %s33, 1
          %s244 = smul.addr %s243, 80
          %s245 = scalar_lea.vmem [#allocation3], %s244
          %s246 = smul.u32 2, %s23
          %248 = vsyncadd %s242, 0
          %s249 = smul.addr %s246, 8
          %s250 = scalar_lea.hbm %s0, %s249
          %s252 = sshll.u32 1, 14
          %s253 = sxor.u32 4294967295, %s252
          %s255 = sld [smem:[#allocation0]]
          %s256 = sadd.s32 2, %s255
          %s258 = sshll.u32 7, 26
          %s259 = sxor.u32 4294967295, %s258
          %s260 = sand.u32 0, %s259
          %s261 = sshll.u32 %s256, 26
          %s262 = sor.u32 %s260, %s261
          %s263 = sshll.u32 %s250, 4
          %s264 = int_to_ptr.hbm [resolvable:$true] %s263
          %s265 = sshll.u32 %s245, 4
          %s266 = int_to_ptr.vmem [resolvable:$true] %s265
          %272 = sst [smem:[#allocation13]] 512
          %s273 = scalar_lea.smem [#allocation13], 1
          %274 = sst [smem:[%s273]] 256
          %s275 = scalar_lea.smem [#allocation13], 2
          %276 = sst [smem:[%s275]] 2
          %s277 = scalar_lea.smem [#allocation13], 3
          %278 = sst [smem:[%s277]] 128
          %s279 = scalar_lea.smem [#allocation13], 4
          %280 = sst [smem:[%s279]] 128
          %s281 = scalar_lea.smem [#allocation13], 5
          %282 = sst [smem:[%s281]] 8
          %284 = dma.general %s264, 1280, %s266, %s242, [#allocation12], [#allocation13], %s262, 0
        $region36: #{tpu_custom_call.1} parent=31 // pred_fallthru
          _
        // Predicated region
        $region37: #{tpu_custom_call.1} parent=31 // pred_check
          %p285 = pneg %p69
        $region38: #{tpu_custom_call.1} parent=31 // pred_check_branch
          %287 = sbr.rel (%p285) target = $region40
        $region39: #{tpu_custom_call.1} parent=31 // pred_region
          %s288 = sand.u32 %s23, 1
          %s289 = scalar_lea.sflag [#allocation7], %s288
          %s290 = sand.u32 %s59, 1
          %s291 = smul.addr %s290, 16
          %s292 = scalar_lea.vmem [#allocation6], %s291
          %s293 = smul.u32 2, %s23
          %295 = vsyncadd %s289, 0
          %s296 = smul.addr %s293, 8
          %s297 = scalar_lea.hbm %s1, %s296
          %s298 = sshll.u32 %s297, 4
          %s299 = int_to_ptr.hbm [resolvable:$true] %s298
          %s300 = sshll.u32 %s292, 4
          %s301 = int_to_ptr.vmem [resolvable:$true] %s300
          %306 = dma.hbm_to_vmem [thread:$0]  %s299, 256, %s301, %s289, 128, 128, 8
        $region40: #{tpu_custom_call.1} parent=31 // pred_fallthru
          _
      $region32: #{tpu_custom_call.1} parent=5 // pred_fallthru
        _
      %p307 = scmp.le.s32.totalorder 1, %s23
      %p308 = scmp.lt.s32.totalorder %s23, 3
      %p309 = pnand %p307, %p308
      %p310 = pneg %p309
      // Predicated region
      $region41: #{tpu_custom_call.1} parent=5 // pred_check
        _
      $region42: #{tpu_custom_call.1} parent=5 // pred_check_branch
        %312 = sbr.rel (%p309) target = $region44
      $region43: #{tpu_custom_call.1} parent=5 // pred_region
        %s313 = ssub.s32 %s23, 1
        %s314 = sand.u32 %s36, 1
        %s315 = scalar_lea.sflag [#allocation4], %s314
        %s316 = sand.u32 %s36, 1
        %s317 = smul.addr %s316, 80
        %s318 = scalar_lea.vmem [#allocation3], %s317
        // Predicated region
        $region45: #{tpu_custom_call.1} parent=43 // pred_check
          %p319 = pneg %p49
        $region46: #{tpu_custom_call.1} parent=43 // pred_check_branch
          %321 = sbr.rel (%p319) target = $region48
        $region47: #{tpu_custom_call.1} parent=43 // pred_region
          %323 = dma.done %s315, 1280
        $region48: #{tpu_custom_call.1} parent=43 // pred_fallthru
          _
        %s324 = sand.u32 %s28, 1
        %s325 = scalar_lea.sflag [#allocation7], %s324
        %s326 = sand.u32 %s62, 1
        %s327 = smul.addr %s326, 16
        %s328 = scalar_lea.vmem [#allocation6], %s327
        // Predicated region
        $region49: #{tpu_custom_call.1} parent=43 // pred_check
          %p329 = pneg %p75
        $region50: #{tpu_custom_call.1} parent=43 // pred_check_branch
          %331 = sbr.rel (%p329) target = $region52
        $region51: #{tpu_custom_call.1} parent=43 // pred_region
          %333 = dma.done %s325, 256
        $region52: #{tpu_custom_call.1} parent=43 // pred_fallthru
          _
        // Predicated region
        $region53: #{tpu_custom_call.1} parent=43 // pred_check
          %p334 = pneg %p96
        $region54: #{tpu_custom_call.1} parent=43 // pred_check_branch
          %336 = sbr.rel (%p334) target = $region56
        $region55: #{tpu_custom_call.1} parent=43 // pred_region
          %338 = dma.done [#allocation7], 512
        $region56: #{tpu_custom_call.1} parent=43 // pred_fallthru
          _
        // Predicated region
        $region57: #{tpu_custom_call.1} parent=43 // pred_check
          %p339 = pneg %p159
        $region58: #{tpu_custom_call.1} parent=43 // pred_check_branch
          %341 = sbr.rel (%p339) target = $region60
        $region59: #{tpu_custom_call.1} parent=43 // pred_region
          %343 = dma.done [#allocation10], 1024
        $region60: #{tpu_custom_call.1} parent=43 // pred_fallthru
          _
        %s344 = sand.u32 %s36, 1
        %s345 = scalar_lea.sflag [#allocation4], %s344
        %s346 = sand.u32 %s36, 1
        %s347 = smul.addr %s346, 80
        %s348 = scalar_lea.vmem [#allocation3], %s347
        %p349 = pneg %p49
        %p350 = pneg %p46
        %s351 = sand.u32 %s28, 1
        %s352 = scalar_lea.sflag [#allocation7], %s351
        %s353 = sand.u32 %s62, 1
        %s354 = smul.addr %s353, 16
        %s355 = scalar_lea.vmem [#allocation6], %s354
        %p356 = pneg %p75
        %p357 = pneg %p72
        %p358 = pneg %p96
        %p359 = pneg %p93
        %p360 = pneg %p117
        %p361 = pneg %p114
        %p362 = pneg %p138
        %p363 = pneg %p135
        %p364 = pneg %p159
        %p365 = pneg %p156
        %p366 = pneg %p185
        %p367 = pneg %p182
        %s368 = sand.u32 %s172, 1
        %s369 = scalar_lea.sflag [#allocation5], %s368
        %s370 = sand.u32 %s172, 1
        %s371 = smul.addr %s370, 16
        %s372 = scalar_lea.vmem [#allocation11], %s371
        %s373 = smul.u32 2, %s28
        %s374 = smul.u32 2, %s28
        %s375 = smul.u32 2, %s28
        %v376 = vld [vmem:[#allocation8] sm:$0xff]
        %v377 = vld [vmem:[#allocation8 + $0x8] sm:$0xff]
        %v378 = vld [vmem:[#allocation8 + $0x10] sm:$0xff]
        %v379 = vld [vmem:[#allocation8 + $0x18] sm:$0xff]
        %v380 = vld [vmem:[%s3] sm:$0x1]
        %v381 = vld [vmem:[#allocation9] sm:$0xff]
        %v382 = vld [vmem:[#allocation9 + $0x8] sm:$0xff]
        %v383 = vld [vmem:[#allocation9 + $0x10] sm:$0xff]
        %v384 = vld [vmem:[#allocation9 + $0x18] sm:$0xff]
        %v385 = vld [vmem:[#allocation9 + $0x20] sm:$0xff]
        %v386 = vld [vmem:[#allocation9 + $0x28] sm:$0xff]
        %v387 = vld [vmem:[#allocation9 + $0x30] sm:$0xff]
        %v388 = vld [vmem:[#allocation9 + $0x38] sm:$0xff]
        %s389 = sld [smem:[#allocation2]]
        %v390 = vld [vmem:[%s318] sm:$0xff]
        %v391 = vld [vmem:[%s318 + $0x8] sm:$0xff]
        %vm392 = vcmask 261120
        %v394 = vsel %vm392, %v390, 0
        %v397 = vsel %vm392, %v391, 0
        %399 = vmatpush.msra.mxu0 0.0
        %400 = vmatpush.msra.mxu0 0.0
        %401 = vmatpush.msra.mxu0 0.0
        %402 = vmatpush.msra.mxu0 0.0
        %403 = vmatpush.msra.mxu0 0.0
        %404 = vmatpush.msra.mxu0 0.0
        %405 = vmatpush.msra.mxu0 0.0
        %406 = vmatpush.msra.mxu0 0.0
        %407 = vmatpush.msra.mxu0 0.0
        %408 = vmatpush.msra.mxu0 0.0
        %409 = vmatpush.msra.mxu0 0.0
        %410 = vmatpush.msra.mxu0 0.0
        %411 = vmatpush.msra.mxu0 %v379
        %412 = vmatpush.msra.mxu0 %v378
        %413 = vmatpush.msra.mxu0 %v377
        %414 = vmatpush.msra.mxu0 %v376
        %415 = vmatmul.f32.gmra.mxu0 %v394
        %v416 = vpop.f32.mrf.mxu0
        %v417 = vadd.f32 0.0, %v416
        %418 = vmatmul.f32.gmra.mxu0 %v397
        %v419 = vpop.f32.mrf.mxu0
        %v420 = vadd.f32 0.0, %v419
        %421 = vdwg.mxu0
        %s422 = scalar_lea.vmem %s318, 16 [#allocation3]
        %v423 = vld [vmem:[%s422] sm:$0xff]
        %v424 = vld [vmem:[%s422 + $0x8] sm:$0xff]
        %v426 = vsel %vm392, %v423, 0
        %v429 = vsel %vm392, %v424, 0
        %431 = vmatpush.msra.mxu0 0.0
        %432 = vmatpush.msra.mxu0 0.0
        %433 = vmatpush.msra.mxu0 0.0
        %434 = vmatpush.msra.mxu0 0.0
        %435 = vmatpush.msra.mxu0 0.0
        %436 = vmatpush.msra.mxu0 0.0
        %437 = vmatpush.msra.mxu0 0.0
        %438 = vmatpush.msra.mxu0 0.0
        %439 = vmatpush.msra.mxu0 0.0
        %440 = vmatpush.msra.mxu0 0.0
        %441 = vmatpush.msra.mxu0 0.0
        %442 = vmatpush.msra.mxu0 0.0
        %443 = vmatpush.msra.mxu0 %v379
        %444 = vmatpush.msra.mxu0 %v378
        %445 = vmatpush.msra.mxu0 %v377
        %446 = vmatpush.msra.mxu0 %v376
        %447 = vmatmul.f32.gmra.mxu0 %v426
        %v448 = vpop.f32.mrf.mxu0
        %v449 = vadd.f32 0.0, %v448
        %450 = vmatmul.f32.gmra.mxu0 %v429
        %v451 = vpop.f32.mrf.mxu0
        %v452 = vadd.f32 0.0, %v451
        %453 = vdwg.mxu0
        %s454 = scalar_lea.vmem %s318, 32 [#allocation3]
        %v455 = vld [vmem:[%s454] sm:$0xff]
        %v456 = vld [vmem:[%s454 + $0x8] sm:$0xff]
        %v458 = vsel %vm392, %v455, 0
        %v461 = vsel %vm392, %v456, 0
        %463 = vmatpush.msra.mxu0 0.0
        %464 = vmatpush.msra.mxu0 0.0
        %465 = vmatpush.msra.mxu0 0.0
        %466 = vmatpush.msra.mxu0 0.0
        %467 = vmatpush.msra.mxu0 0.0
        %468 = vmatpush.msra.mxu0 0.0
        %469 = vmatpush.msra.mxu0 0.0
        %470 = vmatpush.msra.mxu0 0.0
        %471 = vmatpush.msra.mxu0 0.0
        %472 = vmatpush.msra.mxu0 0.0
        %473 = vmatpush.msra.mxu0 0.0
        %474 = vmatpush.msra.mxu0 0.0
        %475 = vmatpush.msra.mxu0 %v379
        %476 = vmatpush.msra.mxu0 %v378
        %477 = vmatpush.msra.mxu0 %v377
        %478 = vmatpush.msra.mxu0 %v376
        %479 = vmatmul.f32.gmra.mxu0 %v458
        %v480 = vpop.f32.mrf.mxu0
        %v481 = vadd.f32 0.0, %v480
        %482 = vmatmul.f32.gmra.mxu0 %v461
        %v483 = vpop.f32.mrf.mxu0
        %v484 = vadd.f32 0.0, %v483
        %485 = vdwg.mxu0
        %s486 = scalar_lea.vmem %s318, 48 [#allocation3]
        %v487 = vld [vmem:[%s486] sm:$0xff]
        %v488 = vld [vmem:[%s486 + $0x8] sm:$0xff]
        %v490 = vsel %vm392, %v487, 0
        %v493 = vsel %vm392, %v488, 0
        %495 = vmatpush.msra.mxu0 0.0
        %496 = vmatpush.msra.mxu0 0.0
        %497 = vmatpush.msra.mxu0 0.0
        %498 = vmatpush.msra.mxu0 0.0
        %499 = vmatpush.msra.mxu0 0.0
        %500 = vmatpush.msra.mxu0 0.0
        %501 = vmatpush.msra.mxu0 0.0
        %502 = vmatpush.msra.mxu0 0.0
        %503 = vmatpush.msra.mxu0 0.0
        %504 = vmatpush.msra.mxu0 0.0
        %505 = vmatpush.msra.mxu0 0.0
        %506 = vmatpush.msra.mxu0 0.0
        %507 = vmatpush.msra.mxu0 %v379
        %508 = vmatpush.msra.mxu0 %v378
        %509 = vmatpush.msra.mxu0 %v377
        %510 = vmatpush.msra.mxu0 %v376
        %511 = vmatmul.f32.gmra.mxu0 %v490
        %v512 = vpop.f32.mrf.mxu0
        %v513 = vadd.f32 0.0, %v512
        %514 = vmatmul.f32.gmra.mxu0 %v493
        %v515 = vpop.f32.mrf.mxu0
        %v516 = vadd.f32 0.0, %v515
        %517 = vdwg.mxu0
        %s518 = scalar_lea.vmem %s318, 64 [#allocation3]
        %v519 = vld [vmem:[%s518] sm:$0xff]
        %v520 = vld [vmem:[%s518 + $0x8] sm:$0xff]
        %v522 = vsel %vm392, %v519, 0
        %v525 = vsel %vm392, %v520, 0
        %527 = vmatpush.msra.mxu0 0.0
        %528 = vmatpush.msra.mxu0 0.0
        %529 = vmatpush.msra.mxu0 0.0
        %530 = vmatpush.msra.mxu0 0.0
        %531 = vmatpush.msra.mxu0 0.0
        %532 = vmatpush.msra.mxu0 0.0
        %533 = vmatpush.msra.mxu0 0.0
        %534 = vmatpush.msra.mxu0 0.0
        %535 = vmatpush.msra.mxu0 0.0
        %536 = vmatpush.msra.mxu0 0.0
        %537 = vmatpush.msra.mxu0 0.0
        %538 = vmatpush.msra.mxu0 0.0
        %539 = vmatpush.msra.mxu0 %v379
        %540 = vmatpush.msra.mxu0 %v378
        %541 = vmatpush.msra.mxu0 %v377
        %542 = vmatpush.msra.mxu0 %v376
        %543 = vmatmul.f32.gmra.mxu0 %v522
        %v544 = vpop.f32.mrf.mxu0
        %v545 = vadd.f32 0.0, %v544
        %546 = vmatmul.f32.gmra.mxu0 %v525
        %v547 = vpop.f32.mrf.mxu0
        %v548 = vadd.f32 0.0, %v547
        %549 = vdwg.mxu0
        %v550 = vld [vmem:[%s328] sm:$0xff]
        %v551 = vld [vmem:[%s328 + $0x8] sm:$0xff]
        %553 = vset.pattern.permute.xlu0 0
        %554 = vperm.xlu0 %553, %v550
        %v555 = vpop.permute.xlu0 %554
        %558 = vset.pattern.permute.xlu0 0
        %559 = vperm.xlu0 %558, %v551
        %v560 = vpop.permute.xlu0 %559
        %v562 = vmul.f32 %v555, %v417
        %v563 = vmul.f32 %v560, %v420
        %v565 = vperm.slane %v380, 0
        %v567 = vadd.f32 %v565, %v562
        %v568 = vadd.f32 %v565, %v563
        %569 = vset.pattern.permute.xlu0 1
        %570 = vperm.xlu0 %569, %v550
        %v571 = vpop.permute.xlu0 %570
        %573 = vset.pattern.permute.xlu0 1
        %574 = vperm.xlu0 %573, %v551
        %v575 = vpop.permute.xlu0 %574
        %v577 = vmul.f32 %v571, %v449
        %v578 = vmul.f32 %v575, %v452
        %v579 = vadd.f32 %v567, %v577
        %v580 = vadd.f32 %v568, %v578
        %581 = vset.pattern.permute.xlu0 2
        %582 = vperm.xlu0 %581, %v550
        %v583 = vpop.permute.xlu0 %582
        %585 = vset.pattern.permute.xlu0 2
        %586 = vperm.xlu0 %585, %v551
        %v587 = vpop.permute.xlu0 %586
        %v589 = vmul.f32 %v583, %v481
        %v590 = vmul.f32 %v587, %v484
        %v591 = vadd.f32 %v579, %v589
        %v592 = vadd.f32 %v580, %v590
        %593 = vset.pattern.permute.xlu0 3
        %594 = vperm.xlu0 %593, %v550
        %v595 = vpop.permute.xlu0 %594
        %597 = vset.pattern.permute.xlu0 3
        %598 = vperm.xlu0 %597, %v551
        %v599 = vpop.permute.xlu0 %598
        %v601 = vmul.f32 %v595, %v513
        %v602 = vmul.f32 %v599, %v516
        %v603 = vadd.f32 %v591, %v601
        %v604 = vadd.f32 %v592, %v602
        %605 = vset.pattern.permute.xlu0 4
        %606 = vperm.xlu0 %605, %v550
        %v607 = vpop.permute.xlu0 %606
        %609 = vset.pattern.permute.xlu0 4
        %610 = vperm.xlu0 %609, %v551
        %v611 = vpop.permute.xlu0 %610
        %v613 = vmul.f32 %v607, %v545
        %v614 = vmul.f32 %v611, %v548
        %v615 = vadd.f32 %v603, %v613
        %v616 = vadd.f32 %v604, %v614
        %vm617 = vcmp.ge.f32.partialorder %v615, 0.0
        %vm618 = vcmp.ge.f32.partialorder %v616, 0.0
        %v619 = vstv %s389
        %v620 = vmul.f32 %v619, %v615
        %v621 = vmul.f32 %v619, %v616
        %v622 = vsel %vm617, %v615, %v620
        %v623 = vsel %vm618, %v616, %v621
        %624 = vset.pattern.permute.xlu0 5
        %625 = vperm.xlu0 %624, %v550
        %v626 = vpop.permute.xlu0 %625
        %628 = vset.pattern.permute.xlu0 5
        %629 = vperm.xlu0 %628, %v551
        %v630 = vpop.permute.xlu0 %629
        %v632 = vmul.f32 %v626, %v417
        %v633 = vmul.f32 %v630, %v420
        %v634 = vadd.f32 %v565, %v632
        %v635 = vadd.f32 %v565, %v633
        %636 = vset.pattern.permute.xlu0 6
        %637 = vperm.xlu0 %636, %v550
        %v638 = vpop.permute.xlu0 %637
        %640 = vset.pattern.permute.xlu0 6
        %641 = vperm.xlu0 %640, %v551
        %v642 = vpop.permute.xlu0 %641
        %v644 = vmul.f32 %v638, %v449
        %v645 = vmul.f32 %v642, %v452
        %v646 = vadd.f32 %v634, %v644
        %v647 = vadd.f32 %v635, %v645
        %648 = vset.pattern.permute.xlu0 7
        %649 = vperm.xlu0 %648, %v550
        %v650 = vpop.permute.xlu0 %649
        %652 = vset.pattern.permute.xlu0 7
        %653 = vperm.xlu0 %652, %v551
        %v654 = vpop.permute.xlu0 %653
        %v656 = vmul.f32 %v650, %v481
        %v657 = vmul.f32 %v654, %v484
        %v658 = vadd.f32 %v646, %v656
        %v659 = vadd.f32 %v647, %v657
        %660 = vset.pattern.permute.xlu0 8
        %661 = vperm.xlu0 %660, %v550
        %v662 = vpop.permute.xlu0 %661
        %664 = vset.pattern.permute.xlu0 8
        %665 = vperm.xlu0 %664, %v551
        %v666 = vpop.permute.xlu0 %665
        %v668 = vmul.f32 %v662, %v513
        %v669 = vmul.f32 %v666, %v516
        %v670 = vadd.f32 %v658, %v668
        %v671 = vadd.f32 %v659, %v669
        %672 = vset.pattern.permute.xlu0 9
        %673 = vperm.xlu0 %672, %v550
        %v674 = vpop.permute.xlu0 %673
        %676 = vset.pattern.permute.xlu0 9
        %677 = vperm.xlu0 %676, %v551
        %v678 = vpop.permute.xlu0 %677
        %v680 = vmul.f32 %v674, %v545
        %v681 = vmul.f32 %v678, %v548
        %v682 = vadd.f32 %v670, %v680
        %v683 = vadd.f32 %v671, %v681
        %vm684 = vcmp.ge.f32.partialorder %v682, 0.0
        %vm685 = vcmp.ge.f32.partialorder %v683, 0.0
        %v686 = vmul.f32 %v619, %v682
        %v687 = vmul.f32 %v619, %v683
        %v688 = vsel %vm684, %v682, %v686
        %v689 = vsel %vm685, %v683, %v687
        %690 = vset.pattern.permute.xlu0 10
        %691 = vperm.xlu0 %690, %v550
        %v692 = vpop.permute.xlu0 %691
        %694 = vset.pattern.permute.xlu0 10
        %695 = vperm.xlu0 %694, %v551
        %v696 = vpop.permute.xlu0 %695
        %v698 = vmul.f32 %v692, %v417
        %v699 = vmul.f32 %v696, %v420
        %v700 = vadd.f32 %v565, %v698
        %v701 = vadd.f32 %v565, %v699
        %702 = vset.pattern.permute.xlu0 11
        %703 = vperm.xlu0 %702, %v550
        %v704 = vpop.permute.xlu0 %703
        %706 = vset.pattern.permute.xlu0 11
        %707 = vperm.xlu0 %706, %v551
        %v708 = vpop.permute.xlu0 %707
        %v710 = vmul.f32 %v704, %v449
        %v711 = vmul.f32 %v708, %v452
        %v712 = vadd.f32 %v700, %v710
        %v713 = vadd.f32 %v701, %v711
        %714 = vset.pattern.permute.xlu0 12
        %715 = vperm.xlu0 %714, %v550
        %v716 = vpop.permute.xlu0 %715
        %718 = vset.pattern.permute.xlu0 12
        %719 = vperm.xlu0 %718, %v551
        %v720 = vpop.permute.xlu0 %719
        %v722 = vmul.f32 %v716, %v481
        %v723 = vmul.f32 %v720, %v484
        %v724 = vadd.f32 %v712, %v722
        %v725 = vadd.f32 %v713, %v723
        %726 = vset.pattern.permute.xlu0 13
        %727 = vperm.xlu0 %726, %v550
        %v728 = vpop.permute.xlu0 %727
        %730 = vset.pattern.permute.xlu0 13
        %731 = vperm.xlu0 %730, %v551
        %v732 = vpop.permute.xlu0 %731
        %v734 = vmul.f32 %v728, %v513
        %v735 = vmul.f32 %v732, %v516
        %v736 = vadd.f32 %v724, %v734
        %v737 = vadd.f32 %v725, %v735
        %738 = vset.pattern.permute.xlu0 14
        %739 = vperm.xlu0 %738, %v550
        %v740 = vpop.permute.xlu0 %739
        %742 = vset.pattern.permute.xlu0 14
        %743 = vperm.xlu0 %742, %v551
        %v744 = vpop.permute.xlu0 %743
        %v746 = vmul.f32 %v740, %v545
        %v747 = vmul.f32 %v744, %v548
        %v748 = vadd.f32 %v736, %v746
        %v749 = vadd.f32 %v737, %v747
        %vm750 = vcmp.ge.f32.partialorder %v748, 0.0
        %vm751 = vcmp.ge.f32.partialorder %v749, 0.0
        %v752 = vmul.f32 %v619, %v748
        %v753 = vmul.f32 %v619, %v749
        %v754 = vsel %vm750, %v748, %v752
        %v755 = vsel %vm751, %v749, %v753
        %756 = vset.pattern.permute.xlu0 15
        %757 = vperm.xlu0 %756, %v550
        %v758 = vpop.permute.xlu0 %757
        %760 = vset.pattern.permute.xlu0 15
        %761 = vperm.xlu0 %760, %v551
        %v762 = vpop.permute.xlu0 %761
        %v764 = vmul.f32 %v758, %v417
        %v765 = vmul.f32 %v762, %v420
        %v766 = vadd.f32 %v565, %v764
        %v767 = vadd.f32 %v565, %v765
        %768 = vset.pattern.permute.xlu0 16
        %769 = vperm.xlu0 %768, %v550
        %v770 = vpop.permute.xlu0 %769
        %772 = vset.pattern.permute.xlu0 16
        %773 = vperm.xlu0 %772, %v551
        %v774 = vpop.permute.xlu0 %773
        %v776 = vmul.f32 %v770, %v449
        %v777 = vmul.f32 %v774, %v452
        %v778 = vadd.f32 %v766, %v776
        %v779 = vadd.f32 %v767, %v777
        %780 = vset.pattern.permute.xlu0 17
        %781 = vperm.xlu0 %780, %v550
        %v782 = vpop.permute.xlu0 %781
        %784 = vset.pattern.permute.xlu0 17
        %785 = vperm.xlu0 %784, %v551
        %v786 = vpop.permute.xlu0 %785
        %v788 = vmul.f32 %v782, %v481
        %v789 = vmul.f32 %v786, %v484
        %v790 = vadd.f32 %v778, %v788
        %v791 = vadd.f32 %v779, %v789
        %792 = vset.pattern.permute.xlu0 18
        %793 = vperm.xlu0 %792, %v550
        %v794 = vpop.permute.xlu0 %793
        %796 = vset.pattern.permute.xlu0 18
        %797 = vperm.xlu0 %796, %v551
        %v798 = vpop.permute.xlu0 %797
        %v800 = vmul.f32 %v794, %v513
        %v801 = vmul.f32 %v798, %v516
        %v802 = vadd.f32 %v790, %v800
        %v803 = vadd.f32 %v791, %v801
        %804 = vset.pattern.permute.xlu0 19
        %805 = vperm.xlu0 %804, %v550
        %v806 = vpop.permute.xlu0 %805
        %808 = vset.pattern.permute.xlu0 19
        %809 = vperm.xlu0 %808, %v551
        %v810 = vpop.permute.xlu0 %809
        %v812 = vmul.f32 %v806, %v545
        %v813 = vmul.f32 %v810, %v548
        %v814 = vadd.f32 %v802, %v812
        %v815 = vadd.f32 %v803, %v813
        %vm816 = vcmp.ge.f32.partialorder %v814, 0.0
        %vm817 = vcmp.ge.f32.partialorder %v815, 0.0
        %v818 = vmul.f32 %v619, %v814
        %v819 = vmul.f32 %v619, %v815
        %v820 = vsel %vm816, %v814, %v818
        %v821 = vsel %vm817, %v815, %v819
        %822 = vset.pattern.permute.xlu0 20
        %823 = vperm.xlu0 %822, %v550
        %v824 = vpop.permute.xlu0 %823
        %826 = vset.pattern.permute.xlu0 20
        %827 = vperm.xlu0 %826, %v551
        %v828 = vpop.permute.xlu0 %827
        %v830 = vmul.f32 %v824, %v417
        %v831 = vmul.f32 %v828, %v420
        %v832 = vadd.f32 %v565, %v830
        %v833 = vadd.f32 %v565, %v831
        %834 = vset.pattern.permute.xlu0 21
        %835 = vperm.xlu0 %834, %v550
        %v836 = vpop.permute.xlu0 %835
        %838 = vset.pattern.permute.xlu0 21
        %839 = vperm.xlu0 %838, %v551
        %v840 = vpop.permute.xlu0 %839
        %v842 = vmul.f32 %v836, %v449
        %v843 = vmul.f32 %v840, %v452
        %v844 = vadd.f32 %v832, %v842
        %v845 = vadd.f32 %v833, %v843
        %846 = vset.pattern.permute.xlu0 22
        %847 = vperm.xlu0 %846, %v550
        %v848 = vpop.permute.xlu0 %847
        %850 = vset.pattern.permute.xlu0 22
        %851 = vperm.xlu0 %850, %v551
        %v852 = vpop.permute.xlu0 %851
        %v854 = vmul.f32 %v848, %v481
        %v855 = vmul.f32 %v852, %v484
        %v856 = vadd.f32 %v844, %v854
        %v857 = vadd.f32 %v845, %v855
        %858 = vset.pattern.permute.xlu0 23
        %859 = vperm.xlu0 %858, %v550
        %v860 = vpop.permute.xlu0 %859
        %862 = vset.pattern.permute.xlu0 23
        %863 = vperm.xlu0 %862, %v551
        %v864 = vpop.permute.xlu0 %863
        %v866 = vmul.f32 %v860, %v513
        %v867 = vmul.f32 %v864, %v516
        %v868 = vadd.f32 %v856, %v866
        %v869 = vadd.f32 %v857, %v867
        %870 = vset.pattern.permute.xlu0 24
        %871 = vperm.xlu0 %870, %v550
        %v872 = vpop.permute.xlu0 %871
        %874 = vset.pattern.permute.xlu0 24
        %875 = vperm.xlu0 %874, %v551
        %v876 = vpop.permute.xlu0 %875
        %v878 = vmul.f32 %v872, %v545
        %v879 = vmul.f32 %v876, %v548
        %v880 = vadd.f32 %v868, %v878
        %v881 = vadd.f32 %v869, %v879
        %vm882 = vcmp.ge.f32.partialorder %v880, 0.0
        %vm883 = vcmp.ge.f32.partialorder %v881, 0.0
        %v884 = vmul.f32 %v619, %v880
        %v885 = vmul.f32 %v619, %v881
        %v886 = vsel %vm882, %v880, %v884
        %v887 = vsel %vm883, %v881, %v885
        %v888 = vadd.f32 %v622, %v688
        %v889 = vadd.f32 %v623, %v689
        %v890 = vadd.f32 %v888, %v754
        %v891 = vadd.f32 %v889, %v755
        %v892 = vadd.f32 %v890, %v820
        %v893 = vadd.f32 %v891, %v821
        %v894 = vmul.f32 %v892, 0.25
        %v895 = vmul.f32 %v893, 0.25
        %vm896 = vcmask 523264
        %v898 = vsel %vm896, %v886, 0
        %v901 = vsel %vm896, %v887, 0
        %903 = vmatpush.msra.mxu0 0.0
        %904 = vmatpush.msra.mxu0 0.0
        %905 = vmatpush.msra.mxu0 0.0
        %906 = vmatpush.msra.mxu0 0.0
        %907 = vmatpush.msra.mxu0 0.0
        %908 = vmatpush.msra.mxu0 0.0
        %909 = vmatpush.msra.mxu0 0.0
        %910 = vmatpush.msra.mxu0 0.0
        %911 = vmatpush.msra.mxu0 %v388
        %912 = vmatpush.msra.mxu0 %v387
        %913 = vmatpush.msra.mxu0 %v386
        %914 = vmatpush.msra.mxu0 %v385
        %915 = vmatpush.msra.mxu0 %v384
        %916 = vmatpush.msra.mxu0 %v383
        %917 = vmatpush.msra.mxu0 %v382
        %918 = vmatpush.msra.mxu0 %v381
        %919 = vmatmul.f32.gmra.mxu0 %v898
        %v920 = vpop.f32.mrf.mxu0
        %v921 = vadd.f32 0.0, %v920
        %922 = vmatmul.f32.gmra.mxu0 %v901
        %v923 = vpop.f32.mrf.mxu0
        %v924 = vadd.f32 0.0, %v923
        %925 = vdwg.mxu0
        %926 = vst.msk [vmem:[%s372] sm:$0xff] %vm896, %v894
        %927 = vst.msk [vmem:[%s372 + $0x8] sm:$0xff] %vm896, %v895
        %930 = vrot.lane.b32.xlu0 %v921, 64
        %v931 = vpop.permute.xlu0 %930
        %932 = vrot.lane.b32.xlu0 %v924, 64
        %v933 = vpop.permute.xlu0 %932
        %vm936 = vcmask 1048064
        %937 = vst.msk [vmem:[%s372] sm:$0xff] %vm936, %v931
        %938 = vst.msk [vmem:[%s372 + $0x8] sm:$0xff] %vm936, %v933
        %s939 = sand.u32 %s172, 1
        %s940 = scalar_lea.sflag [#allocation5], %s939
        %s941 = sand.u32 %s172, 1
        %s942 = smul.addr %s941, 16
        %s943 = scalar_lea.vmem [#allocation11], %s942
        // Predicated region
        $region61: #{tpu_custom_call.1} parent=43 // pred_check
          %p944 = pneg %p182
        $region62: #{tpu_custom_call.1} parent=43 // pred_check_branch
          %946 = sbr.rel (%p944) target = $region64
        $region63: #{tpu_custom_call.1} parent=43 // pred_region
          %s947 = smul.u32 2, %s28
          %949 = vsyncadd %s940, 0
          %s950 = smul.addr %s947, 8
          %s951 = scalar_lea.hbm %s6, %s950
          %s952 = sshll.u32 %s943, 4
          %s953 = int_to_ptr.vmem [resolvable:$true] %s952
          %s954 = sshll.u32 %s951, 4
          %s955 = int_to_ptr.hbm [resolvable:$true] %s954
          %960 = dma.vmem_to_hbm [thread:$0]  %s953, 256, %s955, %s940, 128, 128, 8
        $region64: #{tpu_custom_call.1} parent=43 // pred_fallthru
          _
      $region44: #{tpu_custom_call.1} parent=5 // pred_fallthru
        _
      %p961 = scmp.le.s32.totalorder 2, %s23
      // Predicated region
      $region65: #{tpu_custom_call.1} parent=5 // pred_check
        %p962 = pneg %p961
      $region66: #{tpu_custom_call.1} parent=5 // pred_check_branch
        %964 = sbr.rel (%p962) target = $region68
      $region67: #{tpu_custom_call.1} parent=5 // pred_region
        %s965 = ssub.s32 %s23, 2
        // Predicated region
        $region69: #{tpu_custom_call.1} parent=67 // pred_check
          %p966 = pneg %p188
        $region70: #{tpu_custom_call.1} parent=67 // pred_check_branch
          %968 = sbr.rel (%p966) target = $region72
        $region71: #{tpu_custom_call.1} parent=67 // pred_region
          %s969 = sand.u32 %s173, 1
          %s970 = scalar_lea.sflag [#allocation5], %s969
          %s971 = sand.u32 %s173, 1
          %s972 = smul.addr %s971, 16
          %s973 = scalar_lea.vmem [#allocation11], %s972
          %975 = dma.done %s970, 256
        $region72: #{tpu_custom_call.1} parent=67 // pred_fallthru
          _
      $region68: #{tpu_custom_call.1} parent=5 // pred_fallthru
        _
    $region6: #{tpu_custom_call.1} parent=1 // loop_footer
      %s27 = sadd.s32 1, %s23
    $region7: #{tpu_custom_call.1} parent=1 // loop_footer_branch
      %22 = sbr.rel target = $region3
    $region8: #{tpu_custom_call.1} parent=1 // loop_exit
      _
    %976 = vsyncpa [#allocation4], 1
    %s977 = scalar_lea.sflag [#allocation4], 1
    %978 = vsyncpa %s977, 1
    %979 = vsyncpa [#allocation7], 1
    %s980 = scalar_lea.sflag [#allocation7], 1
    %981 = vsyncpa %s980, 1
    %982 = vsyncpa [#allocation10], 1
    %983 = vsyncpa [#allocation5], 1
    %s984 = scalar_lea.sflag [#allocation5], 1
    %985 = vsyncpa %s984, 1

</llo_original>
